<compile_context>
chip_gen: v7x
topology: tpu7x:2x2x1
jax: 0.10.0
libtpu: 0.0.40
codegen_flags: <defaults>
</compile_context>

<pallas_src>
import functools

import jax
import jax.numpy as jnp
from jax.experimental import pallas as pl
from jax.experimental.pallas import tpu as pltpu

_SUBLANE = 8
_LANE = 128
_VMEM_CAP_BYTES = 64 * 1024 * 1024        # v7x physical VMEM per TC (portable cap)


def _pooler_kernel(x_ref, w_ref, b_ref, o_ref):
    # x: (tm, H_in), w: (H_in, tn)  [already input-major -> canonical MXU matmul],
    # b: (1, tn), o: (tm, tn).  Accumulate / bias-add / tanh in f32, cast on store.
    acc = jnp.dot(x_ref[...], w_ref[...], preferred_element_type=jnp.float32)
    acc = acc + b_ref[...].astype(jnp.float32)
    o_ref[...] = jnp.tanh(acc).astype(o_ref.dtype)


def _round_up(n, m):
    return ((n + m - 1) // m) * m


def _pick_tm(batch, block_m):
    """Fixed sublane-aligned batch tile; >=2 tiles when B is big enough (v7x 2 TCs)."""
    if batch <= _SUBLANE:
        return batch                                   # single tile == full batch dim
    tm = min(block_m, _round_up(pl.cdiv(batch, 2), _SUBLANE))
    return max(_SUBLANE, tm)


def _pick_tn(h_out, h_in, itemsize, block_n, max_weight_bytes=8 << 20):
    """Feature tile: keep the whole weight VMEM-resident when it's small enough,
    otherwise bound the (H_in, tn) weight tile (large-H / v7x case)."""
    if block_n is not None:
        return min(block_n, h_out)
    if h_out <= _LANE or h_in * h_out * itemsize <= max_weight_bytes:
        return h_out
    tn = (max_weight_bytes // (h_in * itemsize)) // _LANE * _LANE
    return int(min(max(_LANE, tn), h_out))


def prepare_pooler_params(weight, bias):
    """One-time (model-load-time) parameter prep.

    PyTorch nn.Linear weight is (H_out, H_in); transpose once to (H_in, H_out)
    so the kernel never transposes the weight per grid step.
    """
    return weight.T, bias.reshape(1, -1)


def _pooler_call(x, w_t, b2, *, tm, tn, single_buffer_params):
    B, H_in = x.shape
    H_out = w_t.shape[1]
    n_m = pl.cdiv(B, tm)
    n_n = pl.cdiv(H_out, tn)

    weight_resident = (n_n == 1)
    param_kwargs = {}
    if single_buffer_params and weight_resident:
        # Constant index_map -> double buffering buys nothing; halve weight VMEM.
        param_kwargs = dict(pipeline_mode=pl.Buffered(1))

    x_spec = pl.BlockSpec((tm, H_in), lambda i, j: (i, 0))          # marches over batch
    w_spec = pl.BlockSpec((H_in, tn), lambda i, j: (0, j), **param_kwargs)
    b_spec = pl.BlockSpec((1, tn), lambda i, j: (0, j), **param_kwargs)
    o_spec = pl.BlockSpec((tm, tn), lambda i, j: (i, j))

    # Conservative VMEM budget (assume double buffers everywhere) -> explicit limit.
    isz_x = x.dtype.itemsize
    isz_w = w_t.dtype.itemsize
    isz_b = b2.dtype.itemsize
    vmem_needed = (2 * tm * H_in * isz_x          # activation tiles
                   + 2 * H_in * tn * isz_w        # weight tiles
                   + 2 * _SUBLANE * tn * isz_b    # bias (sublane-padded)
                   + 2 * tm * tn * isz_x)         # output tiles
    vmem_limit = int(min(_VMEM_CAP_BYTES,
                         max(2 * vmem_needed + (2 << 20), 16 * 1024 * 1024)))

    cost = pl.CostEstimate(
        flops=2 * B * H_in * H_out,
        transcendentals=B * H_out,
        bytes_accessed=isz_x * B * (H_in + H_out) + isz_w * H_in * H_out + isz_b * H_out,
    )

    return pl.pallas_call(
        _pooler_kernel,
        out_shape=jax.ShapeDtypeStruct((B, H_out), x.dtype),
        grid_spec=pltpu.PrefetchScalarGridSpec(
            num_scalar_prefetch=0,
            grid=(n_m, n_n),                       # batch (parallel) x features (arbitrary)
            in_specs=[x_spec, w_spec, b_spec],
            out_specs=o_spec,
        ),
        compiler_params=pltpu.CompilerParams(
            dimension_semantics=("parallel", "arbitrary"),
            vmem_limit_bytes=vmem_limit,
        ),
        cost_estimate=cost,
    )(x, w_t, b2)


def pooler_forward_pallas(hidden_states, weight_t, bias_2d, *, block_m=None, block_n=None):
    """hidden_states: (B, H_in); weight_t: (H_in, H_out) (pre-transposed); bias_2d: (1, H_out)."""
    B, H_in = hidden_states.shape
    H_out = weight_t.shape[1]

    if block_m is None:
        # Bigger tiles for bf16 (half the bytes per row) -> fewer grid steps.
        block_m = 1024 if hidden_states.dtype.itemsize <= 2 else 512
    tm = _pick_tm(B, block_m)
    tn = _pick_tn(H_out, H_in, weight_t.dtype.itemsize, block_n)

    if pl.cdiv(H_out, tn) == 1:
        try:
            return _pooler_call(hidden_states, weight_t, bias_2d,
                                tm=tm, tn=tn, single_buffer_params=True)
        except Exception:
            # pipeline_mode=pl.Buffered(1) not supported on this JAX build ->
            # fall back to default double buffering (correctness unchanged).
            pass
    return _pooler_call(hidden_states, weight_t, bias_2d,
                        tm=tm, tn=tn, single_buffer_params=False)


def pooler(hidden_states, weight, bias):
    """Dispatcher taking PyTorch-layout params (weight: (H_out, H_in), bias: (H_out,))."""
    B, H = hidden_states.shape
    # TODO(synk): re-validate this threshold with xprof min-of-N timing on real shapes.
    if B < 128 or H < 256:
        # Toy sizes: XLA's fused matmul+tanh beats kernel-launch + grid overhead.
        y = jax.lax.dot_general(hidden_states, weight, (((1,), (1,)), ((), ())))
        return jnp.tanh(y + bias)
    # In a real model, hoist this one-time transpose to parameter-load time.
    w_t, b2 = prepare_pooler_params(weight, bias)
    return pooler_forward_pallas(hidden_states, w_t, b2)


def pooler_reference(hidden_states, weight, bias):
    return jnp.tanh(hidden_states @ weight.T + bias)


if __name__ == "__main__":
    key = jax.random.PRNGKey(0)
    k1, k2, k3 = jax.random.split(key, 3)

    # Small, lane-aligned hidden; batch NOT a multiple of the tile so the
    # no-pad masked partial last tile (20 = 16 + 4 rows) is exercised.
    batch, hidden = 20, 128
    x = jax.random.normal(k1, (batch, hidden), dtype=jnp.float32)

    # Deterministic synthetic nn.Linear(hidden, hidden) parameters (PyTorch layout).
    weight = jax.random.normal(k2, (hidden, hidden), dtype=jnp.float32) * 0.05
    bias = jax.random.normal(k3, (hidden,), dtype=jnp.float32) * 0.05

    ref = pooler_reference(x, weight, bias)

    # One-time parameter prep (load-time in a real model), then force the Pallas
    # path with block_m=16 -> grid=(2, 1): weight-resident VMEM, >=2 batch tiles
    # for megacore sharding, masked partial last tile.
    w_t, b2 = prepare_pooler_params(weight, bias)
    out = pooler_forward_pallas(x, w_t, b2, block_m=16)
    out = jax.block_until_ready(out)
    assert out.shape == (batch, hidden)
    assert jnp.allclose(out, ref, atol=1e-5, rtol=1e-5), "f32 mismatch vs reference"

    # bf16 input path (MXU-native on v6e/v7x); f32 accumulation inside the kernel.
    out_bf16 = pooler_forward_pallas(x.astype(jnp.bfloat16),
                                     w_t.astype(jnp.bfloat16),
                                     b2.astype(jnp.bfloat16),
                                     block_m=16)
    out_bf16 = jax.block_until_ready(out_bf16)
    assert out_bf16.shape == (batch, hidden)
    assert jnp.allclose(out_bf16.astype(jnp.float32), ref, atol=5e-2, rtol=5e-2), \
        "bf16 mismatch vs reference"

    # Sanity-check the size-gated dispatcher too (falls back to XLA at this toy size).
    ref2 = pooler(x, weight, bias)
    assert jnp.allclose(ref2, ref, atol=1e-5, rtol=1e-5)

    print("KERNEL_OK")
</pallas_src>

<mosaic_0001>
module attributes {stable_mosaic.version = 11 : i64} {
  func.func @_pooler_kernel(%arg0: i32, %arg1: i32, %arg2: memref<16x128xf32, #tpu.memory_space<vmem>>, %arg3: memref<128x128xf32, #tpu.memory_space<vmem>>, %arg4: memref<1x128xf32, #tpu.memory_space<vmem>>, %arg5: memref<16x128xf32, #tpu.memory_space<vmem>>) attributes {dimension_semantics = [#tpu.dimension_semantics<parallel>, #tpu.dimension_semantics<arbitrary>], iteration_bounds = array<i64: 2, 1>, scalar_prefetch = 0 : i64, scratch_operands = 0 : i64, tpu.core_type = #tpu.core_type<tc>, window_params = [{transform_indices = @transform_0, window_bounds = array<i64: 16, 128>}, {pipeline_mode = #tpu.pipeline_mode<synchronous>, transform_indices = @transform_1, window_bounds = array<i64: 128, 128>}, {pipeline_mode = #tpu.pipeline_mode<synchronous>, transform_indices = @transform_2, window_bounds = array<i64: 1, 128>}, {transform_indices = @transform_3, window_bounds = array<i64: 16, 128>}]} {
    %c0 = arith.constant 0 : index
    %c0_0 = arith.constant 0 : index
    %0 = vector.load %arg2[%c0, %c0_0] : memref<16x128xf32, #tpu.memory_space<vmem>>, vector<16x128xf32>
    %c0_1 = arith.constant 0 : index
    %c0_2 = arith.constant 0 : index
    %1 = vector.load %arg3[%c0_1, %c0_2] : memref<128x128xf32, #tpu.memory_space<vmem>>, vector<128x128xf32>
    %cst = arith.constant dense<0.000000e+00> : vector<16x128xf32>
    %2 = tpu.matmul %0, %1, %cst {dimension_numbers = #tpu.dot_dimension_numbers<[1], [0], [0], [1], [0, 0, 1, 1], [], []>} : vector<16x128xf32>, vector<128x128xf32>, vector<16x128xf32> -> vector<16x128xf32>
    %c0_3 = arith.constant 0 : index
    %c0_4 = arith.constant 0 : index
    %3 = vector.load %arg4[%c0_3, %c0_4] : memref<1x128xf32, #tpu.memory_space<vmem>>, vector<1x128xf32>
    %4 = vector.broadcast %3 : vector<1x128xf32> to vector<16x128xf32>
    %5 = arith.addf %2, %4 : vector<16x128xf32>
    %6 = math.tanh %5 : vector<16x128xf32>
    %c0_5 = arith.constant 0 : index
    %c0_6 = arith.constant 0 : index
    %7 = vector.load %arg5[%c0_5, %c0_6] : memref<16x128xf32, #tpu.memory_space<vmem>>, vector<16x128xf32>
    tpu.vector_store %arg5[%c0_5, %c0_6], %6 {strides = array<i32>} : memref<16x128xf32, #tpu.memory_space<vmem>>, vector<16x128xf32>,
    return
  }
  func.func @transform_0(%arg0: i32, %arg1: i32) -> (i32, i32) {
    %c0_i32 = arith.constant 0 : i32
    %c0_i32_0 = arith.constant 0 : i32
    return %arg0, %c0_i32 : i32, i32
  }
  func.func @transform_1(%arg0: i32, %arg1: i32) -> (i32, i32) {
    %c0_i32 = arith.constant 0 : i32
    %c0_i32_0 = arith.constant 0 : i32
    return %c0_i32, %arg1 : i32, i32
  }
  func.func @transform_2(%arg0: i32, %arg1: i32) -> (i32, i32) {
    %c0_i32 = arith.constant 0 : i32
    %c0_i32_0 = arith.constant 0 : i32
    return %c0_i32, %arg1 : i32, i32
  }
  func.func @transform_3(%arg0: i32, %arg1: i32) -> (i32, i32) {
    %c0_i32 = arith.constant 0 : i32
    return %arg0, %arg1 : i32, i32
  }
}

module attributes {stable_mosaic.version = 11 : i64} {
  func.func @_pooler_kernel(%arg0: i32, %arg1: i32, %arg2: memref<16x128xf32, #tpu.memory_space<vmem>>, %arg3: memref<128x128xf32, #tpu.memory_space<vmem>>, %arg4: memref<1x128xf32, #tpu.memory_space<vmem>>, %arg5: memref<16x128xf32, #tpu.memory_space<vmem>>) attributes {dimension_semantics = [#tpu.dimension_semantics<parallel>, #tpu.dimension_semantics<arbitrary>], iteration_bounds = array<i64: 2, 1>, scalar_prefetch = 0 : i64, scratch_operands = 0 : i64, tpu.core_type = #tpu.core_type<tc>, window_params = [{transform_indices = @transform_0, window_bounds = array<i64: 16, 128>}, {transform_indices = @transform_1, window_bounds = array<i64: 128, 128>}, {transform_indices = @transform_2, window_bounds = array<i64: 1, 128>}, {transform_indices = @transform_3, window_bounds = array<i64: 16, 128>}]} {
    %c0 = arith.constant 0 : index
    %c0_0 = arith.constant 0 : index
    %0 = vector.load %arg2[%c0, %c0_0] : memref<16x128xf32, #tpu.memory_space<vmem>>, vector<16x128xf32>
    %c0_1 = arith.constant 0 : index
    %c0_2 = arith.constant 0 : index
    %1 = vector.load %arg3[%c0_1, %c0_2] : memref<128x128xf32, #tpu.memory_space<vmem>>, vector<128x128xf32>
    %cst = arith.constant dense<0.000000e+00> : vector<16x128xf32>
    %2 = tpu.matmul %0, %1, %cst {dimension_numbers = #tpu.dot_dimension_numbers<[1], [0], [0], [1], [0, 0, 1, 1], [], []>} : vector<16x128xf32>, vector<128x128xf32>, vector<16x128xf32> -> vector<16x128xf32>
    %c0_3 = arith.constant 0 : index
    %c0_4 = arith.constant 0 : index
    %3 = vector.load %arg4[%c0_3, %c0_4] : memref<1x128xf32, #tpu.memory_space<vmem>>, vector<1x128xf32>
    %4 = vector.broadcast %3 : vector<1x128xf32> to vector<16x128xf32>
    %5 = arith.addf %2, %4 : vector<16x128xf32>
    %6 = math.tanh %5 : vector<16x128xf32>
    %c0_5 = arith.constant 0 : index
    %c0_6 = arith.constant 0 : index
    %7 = vector.load %arg5[%c0_5, %c0_6] : memref<16x128xf32, #tpu.memory_space<vmem>>, vector<16x128xf32>
    tpu.vector_store %arg5[%c0_5, %c0_6], %6 {strides = array<i32>} : memref<16x128xf32, #tpu.memory_space<vmem>>, vector<16x128xf32>,
    return
  }
  func.func @transform_0(%arg0: i32, %arg1: i32) -> (i32, i32) {
    %c0_i32 = arith.constant 0 : i32
    %c0_i32_0 = arith.constant 0 : i32
    return %arg0, %c0_i32 : i32, i32
  }
  func.func @transform_1(%arg0: i32, %arg1: i32) -> (i32, i32) {
    %c0_i32 = arith.constant 0 : i32
    %c0_i32_0 = arith.constant 0 : i32
    return %c0_i32, %arg1 : i32, i32
  }
  func.func @transform_2(%arg0: i32, %arg1: i32) -> (i32, i32) {
    %c0_i32 = arith.constant 0 : i32
    %c0_i32_0 = arith.constant 0 : i32
    return %c0_i32, %arg1 : i32, i32
  }
  func.func @transform_3(%arg0: i32, %arg1: i32) -> (i32, i32) {
    %c0_i32 = arith.constant 0 : i32
    return %arg0, %arg1 : i32, i32
  }
}

</mosaic_0001>

<llo_original>
// kernel: tpu_custom_call.1
$region0: #{tpu_custom_call.1}
  #allocation0 [shape = 'u32[]', space=smem, size = 0x4, offset = 0x4, fixed_abs, tag = 'smem constant byte address 0x4 - core index']
  #allocation1 [shape = 'u32[144,128]{1,0:T(1,128)}', space=vmem, size = 0x12000, scoped, tag = 'internal scratch']
  %s0 = inlined_call_operand.hbm [shape: f32[20,128], index: 0, kind: input, shape index: {}]
  %s1 = inlined_call_operand.hbm [shape: f32[128,128], index: 1, kind: input, shape index: {}]
  %s2 = inlined_call_operand.vmem [shape: f32[1,128], index: 2, kind: input, shape index: {}]
  %s3 = inlined_call_operand.hbm [shape: f32[20,128], index: 3, kind: output, shape index: {}]
  %s4 = sld [smem:[#allocation0]]
  $region53: #{tpu_custom_call.1} parent=0
    _
  %s6 = ssub.s32 1, %s4
  %s7 = scalar_select 0, %s6, %s4
  $region1: #{tpu_custom_call.1} parent=0
    #allocation2 [shape = 'u8[16384]{0}', space=vmem, size = 0x4000, scoped, tag = 'input window, operand 0']
    #allocation3 [shape = 's32[2]{0}', space=sflag, size = 0x8, scoped, tag = 'scoped memory for tpu_custom_call.1']
    #allocation4 [shape = 's32[2]{0}', space=sflag, size = 0x8, scoped, tag = 'scoped memory for tpu_custom_call.1']
    #allocation5 [shape = 'u8[65536]{0}', space=vmem, size = 0x10000, scoped, tag = 'input window, operand 1, single buffered']
    #allocation6 [shape = 's32[1]{0}', space=sflag, size = 0x4, scoped, tag = 'scoped memory for tpu_custom_call.1']
    #allocation7 [shape = 'u8[16384]{0}', space=vmem, size = 0x4000, scoped, tag = 'output window, operand 0']
    %8 = vsyncpa [#allocation3], 0
    %s9 = scalar_lea.sflag [#allocation3], 1
    %10 = vsyncpa %s9, 0
    %11 = vsyncpa [#allocation6], 0
    %12 = vsyncpa [#allocation4], 0
    %s13 = scalar_lea.sflag [#allocation4], 1
    %14 = vsyncpa %s13, 0
    loop: start=0, step=1, limit=4
    $region2: #{tpu_custom_call.1} parent=1 // loop_pre_header
      _
    $region3: #{tpu_custom_call.1} parent=1 // loop_header
      %s16 = sphi 0, %s20
      %p17 = scmp.ge.s32.totalorder %s16, 4
      %s23 = sphi 0, %s35
      %s24 = sphi 0, %s31
      %s25 = sphi 0, %s23
      %s26 = sphi 0, %s24
      %s27 = sphi 0, %s25
      %s28 = sphi 0, %s26
      %s38 = sphi 0, %s40
      %s41 = sphi 0, %s38
      %s42 = sphi 0, %s41
      %s58 = sphi 0, %s42
      %s64 = sphi 0, %s66
      %s67 = sphi 0, %s64
      %s68 = sphi 0, %s67
      %s84 = sphi 0, %s68
      %s90 = sphi 0, %s92
      %s93 = sphi 0, %s90
      %s94 = sphi 0, %s93
      %s110 = sphi 0, %s94
      %s118 = sphi 0, %s120
      %s121 = sphi 0, %s118
      %s122 = sphi 0, %s121
      %s138 = sphi 0, %s122
    $region4: #{tpu_custom_call.1} parent=1 // loop_header_branch
      %19 = sbr.rel (%p17) target = $region8
    $region5: #{tpu_custom_call.1} parent=1 // loop_body
      %s21 = ssub.s32 %s16, 1
      %s22 = ssub.s32 %s16, 2
      %s29 = sadd.s32 1, %s24
      %p30 = scmp.ge.s32.totalorder %s29, 1
      %s31 = scalar_select %p30, 0, %s29
      %s32 = sadd.s32 1, %s23
      %s33 = scalar_select %p30, %s32, %s23
      %p34 = scmp.ge.s32.totalorder %s33, 2
      %s35 = scalar_select %p34, 0, %s33
      %s36 = ssub.s32 %s23, %s35
      %p37 = scmp.eq.s32.totalorder %s36, 0
      %s39 = sadd.s32 %s38, 1
      %s40 = scalar_select %p37, %s38, %s39
      %p43 = pneg %p37
      %p44 = scmp.eq.s32.totalorder %s16, 1
      %p45 = por %p43, %p44
      %p46 = scmp.ne.s32.totalorder %s38, %s41
      %p47 = scmp.eq.s32.totalorder %s16, 0
      %p48 = por %p46, %p47
      %p49 = scmp.ne.s32.totalorder %s38, %s41
      %p50 = scmp.eq.s32.totalorder %s21, 1
      %p51 = por %p49, %p50
      %p52 = scmp.ne.s32.totalorder %s41, %s42
      %p53 = scmp.eq.s32.totalorder %s21, 0
      %p54 = por %p52, %p53
      %p55 = scmp.ne.s32.totalorder %s41, %s42
      %p56 = scmp.eq.s32.totalorder %s22, 1
      %p57 = por %p55, %p56
      %p59 = scmp.ne.s32.totalorder %s42, %s58
      %p60 = scmp.eq.s32.totalorder %s22, 0
      %p61 = por %p59, %p60
      %s62 = ssub.s32 %s24, %s31
      %p63 = scmp.eq.s32.totalorder %s62, 0
      %s65 = sadd.s32 %s64, 1
      %s66 = scalar_select %p63, %s64, %s65
      %p69 = pneg %p63
      %p70 = scmp.eq.s32.totalorder %s16, 1
      %p71 = por %p69, %p70
      %p72 = scmp.ne.s32.totalorder %s64, %s67
      %p73 = scmp.eq.s32.totalorder %s16, 0
      %p74 = por %p72, %p73
      %p75 = scmp.ne.s32.totalorder %s64, %s67
      %p76 = scmp.eq.s32.totalorder %s21, 1
      %p77 = por %p75, %p76
      %p78 = scmp.ne.s32.totalorder %s67, %s68
      %p79 = scmp.eq.s32.totalorder %s21, 0
      %p80 = por %p78, %p79
      %p81 = scmp.ne.s32.totalorder %s67, %s68
      %p82 = scmp.eq.s32.totalorder %s22, 1
      %p83 = por %p81, %p82
      %p85 = scmp.ne.s32.totalorder %s68, %s84
      %p86 = scmp.eq.s32.totalorder %s22, 0
      %p87 = por %p85, %p86
      %s88 = ssub.s32 %s24, %s31
      %p89 = scmp.eq.s32.totalorder %s88, 0
      %s91 = sadd.s32 %s90, 1
      %s92 = scalar_select %p89, %s90, %s91
      %p95 = pneg %p89
      %p96 = scmp.eq.s32.totalorder %s16, 1
      %p97 = por %p95, %p96
      %p98 = scmp.ne.s32.totalorder %s90, %s93
      %p99 = scmp.eq.s32.totalorder %s16, 0
      %p100 = por %p98, %p99
      %p101 = scmp.ne.s32.totalorder %s90, %s93
      %p102 = scmp.eq.s32.totalorder %s21, 1
      %p103 = por %p101, %p102
      %p104 = scmp.ne.s32.totalorder %s93, %s94
      %p105 = scmp.eq.s32.totalorder %s21, 0
      %p106 = por %p104, %p105
      %p107 = scmp.ne.s32.totalorder %s93, %s94
      %p108 = scmp.eq.s32.totalorder %s22, 1
      %p109 = por %p107, %p108
      %p111 = scmp.ne.s32.totalorder %s94, %s110
      %p112 = scmp.eq.s32.totalorder %s22, 0
      %p113 = por %p111, %p112
      %s114 = ssub.s32 %s23, %s35
      %s115 = ssub.s32 %s24, %s31
      %s116 = sor.u32 %s114, %s115
      %p117 = scmp.eq.s32.totalorder %s116, 0
      %s119 = sadd.s32 %s118, 1
      %s120 = scalar_select %p117, %s118, %s119
      %p123 = pneg %p117
      %p124 = scmp.eq.s32.totalorder %s16, 1
      %p125 = por %p123, %p124
      %p126 = scmp.ne.s32.totalorder %s118, %s121
      %p127 = scmp.eq.s32.totalorder %s16, 0
      %p128 = por %p126, %p127
      %p129 = scmp.ne.s32.totalorder %s118, %s121
      %p130 = scmp.eq.s32.totalorder %s21, 1
      %p131 = por %p129, %p130
      %p132 = scmp.ne.s32.totalorder %s121, %s122
      %p133 = scmp.eq.s32.totalorder %s21, 0
      %p134 = por %p132, %p133
      %p135 = scmp.ne.s32.totalorder %s121, %s122
      %p136 = scmp.eq.s32.totalorder %s22, 1
      %p137 = por %p135, %p136
      %p139 = scmp.ne.s32.totalorder %s122, %s138
      %p140 = scmp.eq.s32.totalorder %s22, 0
      %p141 = por %p139, %p140
      %p142 = scmp.le.s32.totalorder 1, %s16
      %p143 = scmp.lt.s32.totalorder %s16, 3
      %p144 = pnand %p142, %p143
      %p145 = pneg %p144
      // Predicated region
      $region9: #{tpu_custom_call.1} parent=5 // pred_check
        _
      $region10: #{tpu_custom_call.1} parent=5 // pred_check_branch
        %147 = sbr.rel (%p144) target = $region12
      $region11: #{tpu_custom_call.1} parent=5 // pred_region
        %s148 = ssub.s32 %s16, 1
        // Predicated region
        $region13: #{tpu_custom_call.1} parent=11 // pred_check
          %p149 = pneg %p80
        $region14: #{tpu_custom_call.1} parent=11 // pred_check_branch
          %151 = sbr.rel (%p149) target = $region16
        $region15: #{tpu_custom_call.1} parent=11 // pred_region
          %s153 = ssub.s32 2048, 2048
          %154 = vsyncadd [#allocation6], %s153
          %s155 = smul.addr %s26, 128
          %s156 = scalar_lea.hbm %s1, %s155
          %s157 = sshll.u32 [#allocation5], 4
          %s158 = int_to_ptr.vmem [resolvable:$true] %s157
          %163 = dma.hbm_to_vmem [thread:$0]  %s156, 2048, %s158, [#allocation6], 128, 128, 8
        $region16: #{tpu_custom_call.1} parent=11 // pred_fallthru
          _
        // Predicated region
        $region17: #{tpu_custom_call.1} parent=11 // pred_check
          %p164 = pneg %p106
        $region18: #{tpu_custom_call.1} parent=11 // pred_check_branch
          %166 = sbr.rel (%p164) target = $region20
        $region19: #{tpu_custom_call.1} parent=11 // pred_region
          %p167 = scmp.lt.s32.totalorder %s26, 0
          %s168 = scalar_select %p167, %s26, 0
          %s169 = scalar_lea.vmem %s2, %s168
        $region20: #{tpu_custom_call.1} parent=11 // pred_fallthru
          _
      $region12: #{tpu_custom_call.1} parent=5 // pred_fallthru
        _
      %p170 = scmp.lt.s32.totalorder %s16, 2
      // Predicated region
      $region21: #{tpu_custom_call.1} parent=5 // pred_check
        %p171 = pneg %p170
      $region22: #{tpu_custom_call.1} parent=5 // pred_check_branch
        %173 = sbr.rel (%p171) target = $region24
      $region23: #{tpu_custom_call.1} parent=5 // pred_region
        // Predicated region
        $region25: #{tpu_custom_call.1} parent=23 // pred_check
          %p174 = pneg %p48
        $region26: #{tpu_custom_call.1} parent=23 // pred_check_branch
          %176 = sbr.rel (%p174) target = $region28
        $region27: #{tpu_custom_call.1} parent=23 // pred_region
          %s177 = sand.u32 %s38, 1
          %s178 = scalar_lea.sflag [#allocation3], %s177
          %s179 = sand.u32 %s38, 1
          %s180 = smul.addr %s179, 16
          %s181 = scalar_lea.vmem [#allocation2], %s180
          %s182 = smul.u32 2, %s23
          %s183 = ssub.s32 3, %s182
          %p184 = scmp.lt.s32.totalorder %s183, 2
          %s185 = scalar_select %p184, %s183, 2
          %s186 = smul.u32 128, %s185
          %s188 = ssub.s32 256, %s186
          %189 = vsyncadd %s178, %s188
          %p190 = scmp.ne.s32.totalorder 0, %s186
          %s191 = smul.addr %s182, 128
          %s192 = scalar_lea.hbm %s0, %s191
          %s193 = smul.u32 8, %s185
          %s194 = sshll.u32 %s181, 4
          %s195 = int_to_ptr.vmem [resolvable:$true] %s194
          %s196 = sshll.u32 %s193, 4
          %200 = dma.hbm_to_vmem [thread:$0]  (%p190), %s192, %s196, %s195, %s178, 128, 128, 8
        $region28: #{tpu_custom_call.1} parent=23 // pred_fallthru
          _
      $region24: #{tpu_custom_call.1} parent=5 // pred_fallthru
        _
      %p201 = scmp.le.s32.totalorder 1, %s16
      %p202 = scmp.lt.s32.totalorder %s16, 3
      %p203 = pnand %p201, %p202
      %p204 = pneg %p203
      // Predicated region
      $region29: #{tpu_custom_call.1} parent=5 // pred_check
        _
      $region30: #{tpu_custom_call.1} parent=5 // pred_check_branch
        %206 = sbr.rel (%p203) target = $region32
      $region31: #{tpu_custom_call.1} parent=5 // pred_region
        %s207 = ssub.s32 %s16, 1
        %s208 = sand.u32 %s41, 1
        %s209 = scalar_lea.sflag [#allocation3], %s208
        %s210 = sand.u32 %s41, 1
        %s211 = smul.addr %s210, 16
        %s212 = scalar_lea.vmem [#allocation2], %s211
        // Predicated region
        $region33: #{tpu_custom_call.1} parent=31 // pred_check
          %p213 = pneg %p54
        $region34: #{tpu_custom_call.1} parent=31 // pred_check_branch
          %215 = sbr.rel (%p213) target = $region36
        $region35: #{tpu_custom_call.1} parent=31 // pred_region
          %216 = dma.done %s209, 256
        $region36: #{tpu_custom_call.1} parent=31 // pred_fallthru
          _
        // Predicated region
        $region37: #{tpu_custom_call.1} parent=31 // pred_check
          %p217 = pneg %p80
        $region38: #{tpu_custom_call.1} parent=31 // pred_check_branch
          %219 = sbr.rel (%p217) target = $region40
        $region39: #{tpu_custom_call.1} parent=31 // pred_region
          %220 = dma.done [#allocation6], 2048
        $region40: #{tpu_custom_call.1} parent=31 // pred_fallthru
          _
        %s221 = sand.u32 %s41, 1
        %s222 = scalar_lea.sflag [#allocation3], %s221
        %s223 = sand.u32 %s41, 1
        %s224 = smul.addr %s223, 16
        %s225 = scalar_lea.vmem [#allocation2], %s224
        %p226 = pneg %p54
        %p227 = pneg %p51
        %p228 = pneg %p80
        %p229 = pneg %p77
        %p230 = scmp.lt.s32.totalorder %s26, 0
        %s231 = scalar_select %p230, %s26, 0
        %s232 = scalar_lea.vmem %s2, %s231
        %p233 = pneg %p106
        %p234 = pneg %p103
        %p235 = pneg %p134
        %p236 = pneg %p131
        %s237 = sand.u32 %s121, 1
        %s238 = scalar_lea.sflag [#allocation4], %s237
        %s239 = sand.u32 %s121, 1
        %s240 = smul.addr %s239, 16
        %s241 = scalar_lea.vmem [#allocation7], %s240
        %s242 = smul.u32 2, %s25
        %s243 = ssub.s32 3, %s242
        %p244 = scmp.lt.s32.totalorder %s243, 2
        %s245 = scalar_select %p244, %s243, 2
        %s246 = smul.u32 128, %s245
        %p247 = scmp.lt.s32.totalorder %s26, 0
        %s248 = scalar_select %p247, %s26, 0
        %s249 = scalar_lea.vmem %s2, %s248
        %s250 = smul.u32 2, %s25
        %s251 = ssub.s32 3, %s250
        %p252 = scmp.lt.s32.totalorder %s251, 2
        %s253 = scalar_select %p252, %s251, 2
        %s254 = smul.u32 128, %s253
        %v255 = vld [vmem:[%s212] sm:$0xff]
        %v256 = vld [vmem:[%s212 + $0x8] sm:$0xff]
        %v257 = vld [vmem:[#allocation5] sm:$0xff]
        %v258 = vld [vmem:[#allocation5 + $0x8] sm:$0xff]
        %v259 = vld [vmem:[#allocation5 + $0x10] sm:$0xff]
        %v260 = vld [vmem:[#allocation5 + $0x18] sm:$0xff]
        %v261 = vld [vmem:[#allocation5 + $0x20] sm:$0xff]
        %v262 = vld [vmem:[#allocation5 + $0x28] sm:$0xff]
        %v263 = vld [vmem:[#allocation5 + $0x30] sm:$0xff]
        %v264 = vld [vmem:[#allocation5 + $0x38] sm:$0xff]
        %v265 = vld [vmem:[#allocation5 + $0x40] sm:$0xff]
        %v266 = vld [vmem:[#allocation5 + $0x48] sm:$0xff]
        %v267 = vld [vmem:[#allocation5 + $0x50] sm:$0xff]
        %v268 = vld [vmem:[#allocation5 + $0x58] sm:$0xff]
        %v269 = vld [vmem:[#allocation5 + $0x60] sm:$0xff]
        %v270 = vld [vmem:[#allocation5 + $0x68] sm:$0xff]
        %v271 = vld [vmem:[#allocation5 + $0x70] sm:$0xff]
        %v272 = vld [vmem:[#allocation5 + $0x78] sm:$0xff]
        %v273 = vld [vmem:[%s249] sm:$0x1]
        %v275 = vlaneseq
        %v276 = vshrl.u32 %v275, 7
        %v277 = vsub.s32 0, %v276
        %v278 = vrot.slane %v273, %v277
        %280 = vmatprep.subr.mxu0 0.0
        %281 = vmatpush1.msra.mxu0 %v257
        %282 = vmatprep.subr.mxu0 0.0
        %283 = vmatpush1.msra.mxu0 %v258
        %284 = vmatprep.subr.mxu0 0.0
        %285 = vmatpush1.msra.mxu0 %v259
        %286 = vmatprep.subr.mxu0 0.0
        %287 = vmatpush1.msra.mxu0 %v260
        %288 = vmatprep.subr.mxu0 0.0
        %289 = vmatpush1.msra.mxu0 %v261
        %290 = vmatprep.subr.mxu0 0.0
        %291 = vmatpush1.msra.mxu0 %v262
        %292 = vmatprep.subr.mxu0 0.0
        %293 = vmatpush1.msra.mxu0 %v263
        %294 = vmatprep.subr.mxu0 0.0
        %295 = vmatpush1.msra.mxu0 %v264
        %296 = vmatprep.subr.mxu0 0.0
        %297 = vmatpush1.msra.mxu0 %v265
        %298 = vmatprep.subr.mxu0 0.0
        %299 = vmatpush1.msra.mxu0 %v266
        %300 = vmatprep.subr.mxu0 0.0
        %301 = vmatpush1.msra.mxu0 %v267
        %302 = vmatprep.subr.mxu0 0.0
        %303 = vmatpush1.msra.mxu0 %v268
        %304 = vmatprep.subr.mxu0 0.0
        %305 = vmatpush1.msra.mxu0 %v269
        %306 = vmatprep.subr.mxu0 0.0
        %307 = vmatpush1.msra.mxu0 %v270
        %308 = vmatprep.subr.mxu0 0.0
        %309 = vmatpush1.msra.mxu0 %v271
        %310 = vmatprep.subr.mxu0 0.0
        %311 = vmatpush1.msra.mxu0 %v272
        %312 = vmatprep.subr.mxu0 0.0
        %313 = vmatpush1.msra.mxu0 0.0
        %314 = vmatprep.subr.mxu0 0.0
        %315 = vmatpush1.msra.mxu0 0.0
        %316 = vmatprep.subr.mxu0 0.0
        %317 = vmatpush1.msra.mxu0 0.0
        %318 = vmatprep.subr.mxu0 0.0
        %319 = vmatpush1.msra.mxu0 0.0
        %320 = vmatprep.subr.mxu0 0.0
        %321 = vmatpush1.msra.mxu0 0.0
        %322 = vmatprep.subr.mxu0 0.0
        %323 = vmatpush1.msra.mxu0 0.0
        %324 = vmatprep.subr.mxu0 0.0
        %325 = vmatpush1.msra.mxu0 0.0
        %326 = vmatprep.subr.mxu0 0.0
        %327 = vmatpush1.msra.mxu0 0.0
        %328 = vmatprep.subr.mxu0 0.0
        %329 = vmatpush1.msra.mxu0 0.0
        %330 = vmatprep.subr.mxu0 0.0
        %331 = vmatpush1.msra.mxu0 0.0
        %332 = vmatprep.subr.mxu0 0.0
        %333 = vmatpush1.msra.mxu0 0.0
        %334 = vmatprep.subr.mxu0 0.0
        %335 = vmatpush1.msra.mxu0 0.0
        %336 = vmatprep.subr.mxu0 0.0
        %337 = vmatpush1.msra.mxu0 0.0
        %338 = vmatprep.subr.mxu0 0.0
        %339 = vmatpush1.msra.mxu0 0.0
        %340 = vmatprep.subr.mxu0 0.0
        %341 = vmatpush1.msra.mxu0 0.0
        %342 = vmatprep.subr.mxu0 0.0
        %343 = vmatpush1.msra.mxu0 0.0
        %344 = vmatprep.mubr.f32.mxu0 0.0
        %345 = vmatmul.mubr.f32.gmra.mrb[0].mxu0 %v255
        %v346 = vpop.f32.mrb[0].mxu0
        %v347 = vadd.f32 %v278, %v346
        %v348 = vpop.f32.mrb[0].mxu0
        %349 = vmatprep.mubr.f32.mxu0 0.0
        %350 = vmatmul.mubr.f32.gmra.mrb[0].mxu0 %v256
        %v351 = vpop.f32.mrb[0].mxu0
        %v352 = vadd.f32 %v278, %v351
        %v353 = vpop.f32.mrb[0].mxu0
        %354 = vdwg.mxu0
        %v355 = vtanh.pop %v347
        %v356 = vtanh.pop %v352
        %357 = vst [vmem:[%s241] sm:$0xff] %v355
        %358 = vst [vmem:[%s241 + $0x8] sm:$0xff] %v356
        %s359 = sand.u32 %s121, 1
        %s360 = scalar_lea.sflag [#allocation4], %s359
        %s361 = sand.u32 %s121, 1
        %s362 = smul.addr %s361, 16
        %s363 = scalar_lea.vmem [#allocation7], %s362
        // Predicated region
        $region41: #{tpu_custom_call.1} parent=31 // pred_check
          %p364 = pneg %p131
        $region42: #{tpu_custom_call.1} parent=31 // pred_check_branch
          %366 = sbr.rel (%p364) target = $region44
        $region43: #{tpu_custom_call.1} parent=31 // pred_region
          %s367 = smul.u32 2, %s25
          %s368 = ssub.s32 3, %s367
          %p369 = scmp.lt.s32.totalorder %s368, 2
          %s370 = scalar_select %p369, %s368, 2
          %s371 = smul.u32 128, %s370
          %s373 = ssub.s32 256, %s371
          %374 = vsyncadd %s360, %s373
          %p375 = scmp.ne.s32.totalorder 0, %s371
          %s376 = sadd.s32 %s26, %s367
          %s377 = smul.addr %s376, 128
          %s378 = scalar_lea.hbm %s3, %s377
          %s379 = smul.u32 8, %s370
          %s380 = sshll.u32 %s363, 4
          %s381 = int_to_ptr.vmem [resolvable:$true] %s380
          %s382 = sshll.u32 %s379, 4
          %386 = dma.vmem_to_hbm [thread:$0]  (%p375), %s381, %s382, %s378, %s360, 128, 128, 8
        $region44: #{tpu_custom_call.1} parent=31 // pred_fallthru
          _
      $region32: #{tpu_custom_call.1} parent=5 // pred_fallthru
        _
      %p387 = scmp.le.s32.totalorder 2, %s16
      // Predicated region
      $region45: #{tpu_custom_call.1} parent=5 // pred_check
        %p388 = pneg %p387
      $region46: #{tpu_custom_call.1} parent=5 // pred_check_branch
        %390 = sbr.rel (%p388) target = $region48
      $region47: #{tpu_custom_call.1} parent=5 // pred_region
        %s391 = ssub.s32 %s16, 2
        // Predicated region
        $region49: #{tpu_custom_call.1} parent=47 // pred_check
          %p392 = pneg %p137
        $region50: #{tpu_custom_call.1} parent=47 // pred_check_branch
          %394 = sbr.rel (%p392) target = $region52
        $region51: #{tpu_custom_call.1} parent=47 // pred_region
          %s395 = sand.u32 %s122, 1
          %s396 = scalar_lea.sflag [#allocation4], %s395
          %s397 = sand.u32 %s122, 1
          %s398 = smul.addr %s397, 16
          %s399 = scalar_lea.vmem [#allocation7], %s398
          %400 = dma.done %s396, 256
        $region52: #{tpu_custom_call.1} parent=47 // pred_fallthru
          _
      $region48: #{tpu_custom_call.1} parent=5 // pred_fallthru
        _
    $region6: #{tpu_custom_call.1} parent=1 // loop_footer
      %s20 = sadd.s32 1, %s16
    $region7: #{tpu_custom_call.1} parent=1 // loop_footer_branch
      %15 = sbr.rel target = $region3
    $region8: #{tpu_custom_call.1} parent=1 // loop_exit
      _
    %401 = vsyncpa [#allocation3], 1
    %s402 = scalar_lea.sflag [#allocation3], 1
    %403 = vsyncpa %s402, 1
    %404 = vsyncpa [#allocation6], 1
    %405 = vsyncpa [#allocation4], 1
    %s406 = scalar_lea.sflag [#allocation4], 1
    %407 = vsyncpa %s406, 1

// kernel: tpu_custom_call.1
$region0: #{tpu_custom_call.1}
  #allocation0 [shape = 'u32[]', space=smem, size = 0x4, offset = 0x4, fixed_abs, tag = 'smem constant byte address 0x4 - core index']
  #allocation1 [shape = 'u32[144,128]{1,0:T(1,128)}', space=vmem, size = 0x12000, scoped, tag = 'internal scratch']
  %s0 = inlined_call_operand.hbm [shape: f32[20,128], index: 0, kind: input, shape index: {}]
  %s1 = inlined_call_operand.hbm [shape: f32[128,128], index: 1, kind: input, shape index: {}]
  %s2 = inlined_call_operand.vmem [shape: f32[1,128], index: 2, kind: input, shape index: {}]
  %s3 = inlined_call_operand.hbm [shape: f32[20,128], index: 3, kind: output, shape index: {}]
  %s4 = sld [smem:[#allocation0]]
  $region53: #{tpu_custom_call.1} parent=0
    _
  %s6 = ssub.s32 1, %s4
  %s7 = scalar_select 0, %s6, %s4
  $region1: #{tpu_custom_call.1} parent=0
    #allocation2 [shape = 'u8[16384]{0}', space=vmem, size = 0x4000, scoped, tag = 'input window, operand 0']
    #allocation3 [shape = 's32[2]{0}', space=sflag, size = 0x8, scoped, tag = 'scoped memory for tpu_custom_call.1']
    #allocation4 [shape = 's32[2]{0}', space=sflag, size = 0x8, scoped, tag = 'scoped memory for tpu_custom_call.1']
    #allocation5 [shape = 'u8[65536]{0}', space=vmem, size = 0x10000, scoped, tag = 'input window, operand 1, single buffered']
    #allocation6 [shape = 's32[1]{0}', space=sflag, size = 0x4, scoped, tag = 'scoped memory for tpu_custom_call.1']
    #allocation7 [shape = 'u8[16384]{0}', space=vmem, size = 0x4000, scoped, tag = 'output window, operand 0']
    %8 = vsyncpa [#allocation3], 0
    %s9 = scalar_lea.sflag [#allocation3], 1
    %10 = vsyncpa %s9, 0
    %11 = vsyncpa [#allocation6], 0
    %12 = vsyncpa [#allocation4], 0
    %s13 = scalar_lea.sflag [#allocation4], 1
    %14 = vsyncpa %s13, 0
    loop: start=0, step=1, limit=4
    $region2: #{tpu_custom_call.1} parent=1 // loop_pre_header
      _
    $region3: #{tpu_custom_call.1} parent=1 // loop_header
      %s16 = sphi 0, %s20
      %p17 = scmp.ge.s32.totalorder %s16, 4
      %s23 = sphi 0, %s35
      %s24 = sphi 0, %s31
      %s25 = sphi 0, %s23
      %s26 = sphi 0, %s24
      %s27 = sphi 0, %s25
      %s28 = sphi 0, %s26
      %s38 = sphi 0, %s40
      %s41 = sphi 0, %s38
      %s42 = sphi 0, %s41
      %s58 = sphi 0, %s42
      %s64 = sphi 0, %s66
      %s67 = sphi 0, %s64
      %s68 = sphi 0, %s67
      %s84 = sphi 0, %s68
      %s90 = sphi 0, %s92
      %s93 = sphi 0, %s90
      %s94 = sphi 0, %s93
      %s110 = sphi 0, %s94
      %s118 = sphi 0, %s120
      %s121 = sphi 0, %s118
      %s122 = sphi 0, %s121
      %s138 = sphi 0, %s122
    $region4: #{tpu_custom_call.1} parent=1 // loop_header_branch
      %19 = sbr.rel (%p17) target = $region8
    $region5: #{tpu_custom_call.1} parent=1 // loop_body
      %s21 = ssub.s32 %s16, 1
      %s22 = ssub.s32 %s16, 2
      %s29 = sadd.s32 1, %s24
      %p30 = scmp.ge.s32.totalorder %s29, 1
      %s31 = scalar_select %p30, 0, %s29
      %s32 = sadd.s32 1, %s23
      %s33 = scalar_select %p30, %s32, %s23
      %p34 = scmp.ge.s32.totalorder %s33, 2
      %s35 = scalar_select %p34, 0, %s33
      %s36 = ssub.s32 %s23, %s35
      %p37 = scmp.eq.s32.totalorder %s36, 0
      %s39 = sadd.s32 %s38, 1
      %s40 = scalar_select %p37, %s38, %s39
      %p43 = pneg %p37
      %p44 = scmp.eq.s32.totalorder %s16, 1
      %p45 = por %p43, %p44
      %p46 = scmp.ne.s32.totalorder %s38, %s41
      %p47 = scmp.eq.s32.totalorder %s16, 0
      %p48 = por %p46, %p47
      %p49 = scmp.ne.s32.totalorder %s38, %s41
      %p50 = scmp.eq.s32.totalorder %s21, 1
      %p51 = por %p49, %p50
      %p52 = scmp.ne.s32.totalorder %s41, %s42
      %p53 = scmp.eq.s32.totalorder %s21, 0
      %p54 = por %p52, %p53
      %p55 = scmp.ne.s32.totalorder %s41, %s42
      %p56 = scmp.eq.s32.totalorder %s22, 1
      %p57 = por %p55, %p56
      %p59 = scmp.ne.s32.totalorder %s42, %s58
      %p60 = scmp.eq.s32.totalorder %s22, 0
      %p61 = por %p59, %p60
      %s62 = ssub.s32 %s24, %s31
      %p63 = scmp.eq.s32.totalorder %s62, 0
      %s65 = sadd.s32 %s64, 1
      %s66 = scalar_select %p63, %s64, %s65
      %p69 = pneg %p63
      %p70 = scmp.eq.s32.totalorder %s16, 1
      %p71 = por %p69, %p70
      %p72 = scmp.ne.s32.totalorder %s64, %s67
      %p73 = scmp.eq.s32.totalorder %s16, 0
      %p74 = por %p72, %p73
      %p75 = scmp.ne.s32.totalorder %s64, %s67
      %p76 = scmp.eq.s32.totalorder %s21, 1
      %p77 = por %p75, %p76
      %p78 = scmp.ne.s32.totalorder %s67, %s68
      %p79 = scmp.eq.s32.totalorder %s21, 0
      %p80 = por %p78, %p79
      %p81 = scmp.ne.s32.totalorder %s67, %s68
      %p82 = scmp.eq.s32.totalorder %s22, 1
      %p83 = por %p81, %p82
      %p85 = scmp.ne.s32.totalorder %s68, %s84
      %p86 = scmp.eq.s32.totalorder %s22, 0
      %p87 = por %p85, %p86
      %s88 = ssub.s32 %s24, %s31
      %p89 = scmp.eq.s32.totalorder %s88, 0
      %s91 = sadd.s32 %s90, 1
      %s92 = scalar_select %p89, %s90, %s91
      %p95 = pneg %p89
      %p96 = scmp.eq.s32.totalorder %s16, 1
      %p97 = por %p95, %p96
      %p98 = scmp.ne.s32.totalorder %s90, %s93
      %p99 = scmp.eq.s32.totalorder %s16, 0
      %p100 = por %p98, %p99
      %p101 = scmp.ne.s32.totalorder %s90, %s93
      %p102 = scmp.eq.s32.totalorder %s21, 1
      %p103 = por %p101, %p102
      %p104 = scmp.ne.s32.totalorder %s93, %s94
      %p105 = scmp.eq.s32.totalorder %s21, 0
      %p106 = por %p104, %p105
      %p107 = scmp.ne.s32.totalorder %s93, %s94
      %p108 = scmp.eq.s32.totalorder %s22, 1
      %p109 = por %p107, %p108
      %p111 = scmp.ne.s32.totalorder %s94, %s110
      %p112 = scmp.eq.s32.totalorder %s22, 0
      %p113 = por %p111, %p112
      %s114 = ssub.s32 %s23, %s35
      %s115 = ssub.s32 %s24, %s31
      %s116 = sor.u32 %s114, %s115
      %p117 = scmp.eq.s32.totalorder %s116, 0
      %s119 = sadd.s32 %s118, 1
      %s120 = scalar_select %p117, %s118, %s119
      %p123 = pneg %p117
      %p124 = scmp.eq.s32.totalorder %s16, 1
      %p125 = por %p123, %p124
      %p126 = scmp.ne.s32.totalorder %s118, %s121
      %p127 = scmp.eq.s32.totalorder %s16, 0
      %p128 = por %p126, %p127
      %p129 = scmp.ne.s32.totalorder %s118, %s121
      %p130 = scmp.eq.s32.totalorder %s21, 1
      %p131 = por %p129, %p130
      %p132 = scmp.ne.s32.totalorder %s121, %s122
      %p133 = scmp.eq.s32.totalorder %s21, 0
      %p134 = por %p132, %p133
      %p135 = scmp.ne.s32.totalorder %s121, %s122
      %p136 = scmp.eq.s32.totalorder %s22, 1
      %p137 = por %p135, %p136
      %p139 = scmp.ne.s32.totalorder %s122, %s138
      %p140 = scmp.eq.s32.totalorder %s22, 0
      %p141 = por %p139, %p140
      %p142 = scmp.le.s32.totalorder 1, %s16
      %p143 = scmp.lt.s32.totalorder %s16, 3
      %p144 = pnand %p142, %p143
      %p145 = pneg %p144
      // Predicated region
      $region9: #{tpu_custom_call.1} parent=5 // pred_check
        _
      $region10: #{tpu_custom_call.1} parent=5 // pred_check_branch
        %147 = sbr.rel (%p144) target = $region12
      $region11: #{tpu_custom_call.1} parent=5 // pred_region
        %s148 = ssub.s32 %s16, 1
        // Predicated region
        $region13: #{tpu_custom_call.1} parent=11 // pred_check
          %p149 = pneg %p80
        $region14: #{tpu_custom_call.1} parent=11 // pred_check_branch
          %151 = sbr.rel (%p149) target = $region16
        $region15: #{tpu_custom_call.1} parent=11 // pred_region
          %s153 = ssub.s32 2048, 2048
          %154 = vsyncadd [#allocation6], %s153
          %s155 = smul.addr %s26, 128
          %s156 = scalar_lea.hbm %s1, %s155
          %s157 = sshll.u32 [#allocation5], 4
          %s158 = int_to_ptr.vmem [resolvable:$true] %s157
          %163 = dma.hbm_to_vmem [thread:$0]  %s156, 2048, %s158, [#allocation6], 128, 128, 8
        $region16: #{tpu_custom_call.1} parent=11 // pred_fallthru
          _
        // Predicated region
        $region17: #{tpu_custom_call.1} parent=11 // pred_check
          %p164 = pneg %p106
        $region18: #{tpu_custom_call.1} parent=11 // pred_check_branch
          %166 = sbr.rel (%p164) target = $region20
        $region19: #{tpu_custom_call.1} parent=11 // pred_region
          %p167 = scmp.lt.s32.totalorder %s26, 0
          %s168 = scalar_select %p167, %s26, 0
          %s169 = scalar_lea.vmem %s2, %s168
        $region20: #{tpu_custom_call.1} parent=11 // pred_fallthru
          _
      $region12: #{tpu_custom_call.1} parent=5 // pred_fallthru
        _
      %p170 = scmp.lt.s32.totalorder %s16, 2
      // Predicated region
      $region21: #{tpu_custom_call.1} parent=5 // pred_check
        %p171 = pneg %p170
      $region22: #{tpu_custom_call.1} parent=5 // pred_check_branch
        %173 = sbr.rel (%p171) target = $region24
      $region23: #{tpu_custom_call.1} parent=5 // pred_region
        // Predicated region
        $region25: #{tpu_custom_call.1} parent=23 // pred_check
          %p174 = pneg %p48
        $region26: #{tpu_custom_call.1} parent=23 // pred_check_branch
          %176 = sbr.rel (%p174) target = $region28
        $region27: #{tpu_custom_call.1} parent=23 // pred_region
          %s177 = sand.u32 %s38, 1
          %s178 = scalar_lea.sflag [#allocation3], %s177
          %s179 = sand.u32 %s38, 1
          %s180 = smul.addr %s179, 16
          %s181 = scalar_lea.vmem [#allocation2], %s180
          %s182 = smul.u32 2, %s23
          %s183 = ssub.s32 3, %s182
          %p184 = scmp.lt.s32.totalorder %s183, 2
          %s185 = scalar_select %p184, %s183, 2
          %s186 = smul.u32 128, %s185
          %s188 = ssub.s32 256, %s186
          %189 = vsyncadd %s178, %s188
          %p190 = scmp.ne.s32.totalorder 0, %s186
          %s191 = smul.addr %s182, 128
          %s192 = scalar_lea.hbm %s0, %s191
          %s193 = smul.u32 8, %s185
          %s194 = sshll.u32 %s181, 4
          %s195 = int_to_ptr.vmem [resolvable:$true] %s194
          %s196 = sshll.u32 %s193, 4
          %200 = dma.hbm_to_vmem [thread:$0]  (%p190), %s192, %s196, %s195, %s178, 128, 128, 8
        $region28: #{tpu_custom_call.1} parent=23 // pred_fallthru
          _
      $region24: #{tpu_custom_call.1} parent=5 // pred_fallthru
        _
      %p201 = scmp.le.s32.totalorder 1, %s16
      %p202 = scmp.lt.s32.totalorder %s16, 3
      %p203 = pnand %p201, %p202
      %p204 = pneg %p203
      // Predicated region
      $region29: #{tpu_custom_call.1} parent=5 // pred_check
        _
      $region30: #{tpu_custom_call.1} parent=5 // pred_check_branch
        %206 = sbr.rel (%p203) target = $region32
      $region31: #{tpu_custom_call.1} parent=5 // pred_region
        %s207 = ssub.s32 %s16, 1
        %s208 = sand.u32 %s41, 1
        %s209 = scalar_lea.sflag [#allocation3], %s208
        %s210 = sand.u32 %s41, 1
        %s211 = smul.addr %s210, 16
        %s212 = scalar_lea.vmem [#allocation2], %s211
        // Predicated region
        $region33: #{tpu_custom_call.1} parent=31 // pred_check
          %p213 = pneg %p54
        $region34: #{tpu_custom_call.1} parent=31 // pred_check_branch
          %215 = sbr.rel (%p213) target = $region36
        $region35: #{tpu_custom_call.1} parent=31 // pred_region
          %216 = dma.done %s209, 256
        $region36: #{tpu_custom_call.1} parent=31 // pred_fallthru
          _
        // Predicated region
        $region37: #{tpu_custom_call.1} parent=31 // pred_check
          %p217 = pneg %p80
        $region38: #{tpu_custom_call.1} parent=31 // pred_check_branch
          %219 = sbr.rel (%p217) target = $region40
        $region39: #{tpu_custom_call.1} parent=31 // pred_region
          %220 = dma.done [#allocation6], 2048
        $region40: #{tpu_custom_call.1} parent=31 // pred_fallthru
          _
        %s221 = sand.u32 %s41, 1
        %s222 = scalar_lea.sflag [#allocation3], %s221
        %s223 = sand.u32 %s41, 1
        %s224 = smul.addr %s223, 16
        %s225 = scalar_lea.vmem [#allocation2], %s224
        %p226 = pneg %p54
        %p227 = pneg %p51
        %p228 = pneg %p80
        %p229 = pneg %p77
        %p230 = scmp.lt.s32.totalorder %s26, 0
        %s231 = scalar_select %p230, %s26, 0
        %s232 = scalar_lea.vmem %s2, %s231
        %p233 = pneg %p106
        %p234 = pneg %p103
        %p235 = pneg %p134
        %p236 = pneg %p131
        %s237 = sand.u32 %s121, 1
        %s238 = scalar_lea.sflag [#allocation4], %s237
        %s239 = sand.u32 %s121, 1
        %s240 = smul.addr %s239, 16
        %s241 = scalar_lea.vmem [#allocation7], %s240
        %s242 = smul.u32 2, %s25
        %s243 = ssub.s32 3, %s242
        %p244 = scmp.lt.s32.totalorder %s243, 2
        %s245 = scalar_select %p244, %s243, 2
        %s246 = smul.u32 128, %s245
        %p247 = scmp.lt.s32.totalorder %s26, 0
        %s248 = scalar_select %p247, %s26, 0
        %s249 = scalar_lea.vmem %s2, %s248
        %s250 = smul.u32 2, %s25
        %s251 = ssub.s32 3, %s250
        %p252 = scmp.lt.s32.totalorder %s251, 2
        %s253 = scalar_select %p252, %s251, 2
        %s254 = smul.u32 128, %s253
        %v255 = vld [vmem:[%s212] sm:$0xff]
        %v256 = vld [vmem:[%s212 + $0x8] sm:$0xff]
        %v257 = vld [vmem:[#allocation5] sm:$0xff]
        %v258 = vld [vmem:[#allocation5 + $0x8] sm:$0xff]
        %v259 = vld [vmem:[#allocation5 + $0x10] sm:$0xff]
        %v260 = vld [vmem:[#allocation5 + $0x18] sm:$0xff]
        %v261 = vld [vmem:[#allocation5 + $0x20] sm:$0xff]
        %v262 = vld [vmem:[#allocation5 + $0x28] sm:$0xff]
        %v263 = vld [vmem:[#allocation5 + $0x30] sm:$0xff]
        %v264 = vld [vmem:[#allocation5 + $0x38] sm:$0xff]
        %v265 = vld [vmem:[#allocation5 + $0x40] sm:$0xff]
        %v266 = vld [vmem:[#allocation5 + $0x48] sm:$0xff]
        %v267 = vld [vmem:[#allocation5 + $0x50] sm:$0xff]
        %v268 = vld [vmem:[#allocation5 + $0x58] sm:$0xff]
        %v269 = vld [vmem:[#allocation5 + $0x60] sm:$0xff]
        %v270 = vld [vmem:[#allocation5 + $0x68] sm:$0xff]
        %v271 = vld [vmem:[#allocation5 + $0x70] sm:$0xff]
        %v272 = vld [vmem:[#allocation5 + $0x78] sm:$0xff]
        %v273 = vld [vmem:[%s249] sm:$0x1]
        %v275 = vlaneseq
        %v276 = vshrl.u32 %v275, 7
        %v277 = vsub.s32 0, %v276
        %v278 = vrot.slane %v273, %v277
        %280 = vmatprep.subr.mxu0 0.0
        %281 = vmatpush1.msra.mxu0 %v257
        %282 = vmatprep.subr.mxu0 0.0
        %283 = vmatpush1.msra.mxu0 %v258
        %284 = vmatprep.subr.mxu0 0.0
        %285 = vmatpush1.msra.mxu0 %v259
        %286 = vmatprep.subr.mxu0 0.0
        %287 = vmatpush1.msra.mxu0 %v260
        %288 = vmatprep.subr.mxu0 0.0
        %289 = vmatpush1.msra.mxu0 %v261
        %290 = vmatprep.subr.mxu0 0.0
        %291 = vmatpush1.msra.mxu0 %v262
        %292 = vmatprep.subr.mxu0 0.0
        %293 = vmatpush1.msra.mxu0 %v263
        %294 = vmatprep.subr.mxu0 0.0
        %295 = vmatpush1.msra.mxu0 %v264
        %296 = vmatprep.subr.mxu0 0.0
        %297 = vmatpush1.msra.mxu0 %v265
        %298 = vmatprep.subr.mxu0 0.0
        %299 = vmatpush1.msra.mxu0 %v266
        %300 = vmatprep.subr.mxu0 0.0
        %301 = vmatpush1.msra.mxu0 %v267
        %302 = vmatprep.subr.mxu0 0.0
        %303 = vmatpush1.msra.mxu0 %v268
        %304 = vmatprep.subr.mxu0 0.0
        %305 = vmatpush1.msra.mxu0 %v269
        %306 = vmatprep.subr.mxu0 0.0
        %307 = vmatpush1.msra.mxu0 %v270
        %308 = vmatprep.subr.mxu0 0.0
        %309 = vmatpush1.msra.mxu0 %v271
        %310 = vmatprep.subr.mxu0 0.0
        %311 = vmatpush1.msra.mxu0 %v272
        %312 = vmatprep.subr.mxu0 0.0
        %313 = vmatpush1.msra.mxu0 0.0
        %314 = vmatprep.subr.mxu0 0.0
        %315 = vmatpush1.msra.mxu0 0.0
        %316 = vmatprep.subr.mxu0 0.0
        %317 = vmatpush1.msra.mxu0 0.0
        %318 = vmatprep.subr.mxu0 0.0
        %319 = vmatpush1.msra.mxu0 0.0
        %320 = vmatprep.subr.mxu0 0.0
        %321 = vmatpush1.msra.mxu0 0.0
        %322 = vmatprep.subr.mxu0 0.0
        %323 = vmatpush1.msra.mxu0 0.0
        %324 = vmatprep.subr.mxu0 0.0
        %325 = vmatpush1.msra.mxu0 0.0
        %326 = vmatprep.subr.mxu0 0.0
        %327 = vmatpush1.msra.mxu0 0.0
        %328 = vmatprep.subr.mxu0 0.0
        %329 = vmatpush1.msra.mxu0 0.0
        %330 = vmatprep.subr.mxu0 0.0
        %331 = vmatpush1.msra.mxu0 0.0
        %332 = vmatprep.subr.mxu0 0.0
        %333 = vmatpush1.msra.mxu0 0.0
        %334 = vmatprep.subr.mxu0 0.0
        %335 = vmatpush1.msra.mxu0 0.0
        %336 = vmatprep.subr.mxu0 0.0
        %337 = vmatpush1.msra.mxu0 0.0
        %338 = vmatprep.subr.mxu0 0.0
        %339 = vmatpush1.msra.mxu0 0.0
        %340 = vmatprep.subr.mxu0 0.0
        %341 = vmatpush1.msra.mxu0 0.0
        %342 = vmatprep.subr.mxu0 0.0
        %343 = vmatpush1.msra.mxu0 0.0
        %344 = vmatprep.mubr.f32.mxu0 0.0
        %345 = vmatmul.mubr.f32.gmra.mrb[0].mxu0 %v255
        %v346 = vpop.f32.mrb[0].mxu0
        %v347 = vadd.f32 %v278, %v346
        %v348 = vpop.f32.mrb[0].mxu0
        %349 = vmatprep.mubr.f32.mxu0 0.0
        %350 = vmatmul.mubr.f32.gmra.mrb[0].mxu0 %v256
        %v351 = vpop.f32.mrb[0].mxu0
        %v352 = vadd.f32 %v278, %v351
        %v353 = vpop.f32.mrb[0].mxu0
        %354 = vdwg.mxu0
        %v355 = vtanh.pop %v347
        %v356 = vtanh.pop %v352
        %357 = vst [vmem:[%s241] sm:$0xff] %v355
        %358 = vst [vmem:[%s241 + $0x8] sm:$0xff] %v356
        %s359 = sand.u32 %s121, 1
        %s360 = scalar_lea.sflag [#allocation4], %s359
        %s361 = sand.u32 %s121, 1
        %s362 = smul.addr %s361, 16
        %s363 = scalar_lea.vmem [#allocation7], %s362
        // Predicated region
        $region41: #{tpu_custom_call.1} parent=31 // pred_check
          %p364 = pneg %p131
        $region42: #{tpu_custom_call.1} parent=31 // pred_check_branch
          %366 = sbr.rel (%p364) target = $region44
        $region43: #{tpu_custom_call.1} parent=31 // pred_region
          %s367 = smul.u32 2, %s25
          %s368 = ssub.s32 3, %s367
          %p369 = scmp.lt.s32.totalorder %s368, 2
          %s370 = scalar_select %p369, %s368, 2
          %s371 = smul.u32 128, %s370
          %s373 = ssub.s32 256, %s371
          %374 = vsyncadd %s360, %s373
          %p375 = scmp.ne.s32.totalorder 0, %s371
          %s376 = sadd.s32 %s26, %s367
          %s377 = smul.addr %s376, 128
          %s378 = scalar_lea.hbm %s3, %s377
          %s379 = smul.u32 8, %s370
          %s380 = sshll.u32 %s363, 4
          %s381 = int_to_ptr.vmem [resolvable:$true] %s380
          %s382 = sshll.u32 %s379, 4
          %386 = dma.vmem_to_hbm [thread:$0]  (%p375), %s381, %s382, %s378, %s360, 128, 128, 8
        $region44: #{tpu_custom_call.1} parent=31 // pred_fallthru
          _
      $region32: #{tpu_custom_call.1} parent=5 // pred_fallthru
        _
      %p387 = scmp.le.s32.totalorder 2, %s16
      // Predicated region
      $region45: #{tpu_custom_call.1} parent=5 // pred_check
        %p388 = pneg %p387
      $region46: #{tpu_custom_call.1} parent=5 // pred_check_branch
        %390 = sbr.rel (%p388) target = $region48
      $region47: #{tpu_custom_call.1} parent=5 // pred_region
        %s391 = ssub.s32 %s16, 2
        // Predicated region
        $region49: #{tpu_custom_call.1} parent=47 // pred_check
          %p392 = pneg %p137
        $region50: #{tpu_custom_call.1} parent=47 // pred_check_branch
          %394 = sbr.rel (%p392) target = $region52
        $region51: #{tpu_custom_call.1} parent=47 // pred_region
          %s395 = sand.u32 %s122, 1
          %s396 = scalar_lea.sflag [#allocation4], %s395
          %s397 = sand.u32 %s122, 1
          %s398 = smul.addr %s397, 16
          %s399 = scalar_lea.vmem [#allocation7], %s398
          %400 = dma.done %s396, 256
        $region52: #{tpu_custom_call.1} parent=47 // pred_fallthru
          _
      $region48: #{tpu_custom_call.1} parent=5 // pred_fallthru
        _
    $region6: #{tpu_custom_call.1} parent=1 // loop_footer
      %s20 = sadd.s32 1, %s16
    $region7: #{tpu_custom_call.1} parent=1 // loop_footer_branch
      %15 = sbr.rel target = $region3
    $region8: #{tpu_custom_call.1} parent=1 // loop_exit
      _
    %401 = vsyncpa [#allocation3], 1
    %s402 = scalar_lea.sflag [#allocation3], 1
    %403 = vsyncpa %s402, 1
    %404 = vsyncpa [#allocation6], 1
    %405 = vsyncpa [#allocation4], 1
    %s406 = scalar_lea.sflag [#allocation4], 1
    %407 = vsyncpa %s406, 1

</llo_original>
